<compile_context>
chip_gen: v5e
topology: v5e:2x2
jax: 0.10.0
libtpu: 0.0.40
codegen_flags: <defaults>
</compile_context>

<pallas_src>
import functools

import jax
import jax.numpy as jnp
from jax import lax
from jax.experimental import pallas as pl
from jax.experimental.pallas import tpu as pltpu


_NEG_BIG = -1e30                   # finite mask sentinel (plain Python float!)
_VMEM_LIMIT = 32 * 1024 * 1024     # fits v5e/v6e (128 MiB phys) and v7x (64 MiB phys)


def _round_up(n, m):
    return ((n + m - 1) // m) * m


def _row_tile(n, preferred):
    """Row tile that is a multiple of 8, <= preferred, and gives >=2 programs
    whenever n > 8 (keeps both v7x TensorCores busy)."""
    return min(preferred, max(8, _round_up(pl.cdiv(n, 2), 8)))


# ----------------------------------------------------------------------------
# Fused Q/K/V projection: single pallas_call, row-tiled & software-pipelined.
# ----------------------------------------------------------------------------
def _qkv_proj_kernel(q_ref, k_ref, v_ref, wq_ref, wk_ref, wv_ref,
                     bq_ref, bk_ref, bv_ref, qo_ref, ko_ref, vo_ref,
                     *, compute_dtype):
    def proj(x_ref, w_ref, b_ref, o_ref):
        x = x_ref[...].astype(compute_dtype)
        w = w_ref[...].astype(compute_dtype)
        # x @ W.T without transposing W anywhere (MXU handles the transposed operand).
        y = lax.dot_general(x, w, (((1,), (1,)), ((), ())),
                            preferred_element_type=jnp.float32)
        o_ref[...] = (y + b_ref[...]).astype(o_ref.dtype)

    proj(q_ref, wq_ref, bq_ref, qo_ref)
    proj(k_ref, wk_ref, bk_ref, ko_ref)
    proj(v_ref, wv_ref, bv_ref, vo_ref)


def pallas_qkv_proj(q, k, v, params, *, row_tile=512, compute_dtype=jnp.float32):
    """Computes q@Wq.T+bq, k@Wk.T+bk, v@Wv.T+bv in one kernel launch."""
    bs, seq, d_model = q.shape
    n = bs * seq
    tm = _row_tile(n, row_tile)
    n_pad = _round_up(n, tm)

    def flat(x):
        x = x.reshape(n, d_model)
        if n_pad != n:
            x = jnp.pad(x, ((0, n_pad - n), (0, 0)))
        return x

    x_spec = pl.BlockSpec((tm, d_model), lambda i: (i, 0))
    w_spec = pl.BlockSpec((d_model, d_model), lambda i: (0, 0))
    b_spec = pl.BlockSpec((1, d_model), lambda i: (0, 0))

    kernel = functools.partial(_qkv_proj_kernel, compute_dtype=compute_dtype)

    qo, ko, vo = pl.pallas_call(
        kernel,
        out_shape=[jax.ShapeDtypeStruct((n_pad, d_model), jnp.float32)] * 3,
        grid=(n_pad // tm,),
        in_specs=[x_spec, x_spec, x_spec, w_spec, w_spec, w_spec,
                  b_spec, b_spec, b_spec],
        out_specs=[x_spec, x_spec, x_spec],
        compiler_params=pltpu.CompilerParams(
            dimension_semantics=("parallel",),
            vmem_limit_bytes=_VMEM_LIMIT),
    )(flat(q), flat(k), flat(v),
      params["q_w"], params["k_w"], params["v_w"],                 # untransposed
      params["q_b"].reshape(1, d_model), params["k_b"].reshape(1, d_model),
      params["v_b"].reshape(1, d_model))

    def unflat(x):
        return x[:n].reshape(bs, seq, d_model)

    return unflat(qo), unflat(ko), unflat(vo)


# ----------------------------------------------------------------------------
# Flash-style attention with fused output projection.
# Heads stay packed on the last (lane) axis; per-head matmuls run on static
# feature slices, so loads and the final store are lane-dense (d_model wide).
# ----------------------------------------------------------------------------
def _attn_kernel(*refs, causal, n_heads, d_k, scale, compute_dtype):
    if causal:
        (q_ref, k_ref, v_ref, pmb_ref, wo_ref, bo_ref, o_ref,
         m_ref, l_ref, acc_ref) = refs
        am_ref = None
    else:
        (q_ref, k_ref, v_ref, am_ref, pmb_ref, wo_ref, bo_ref, o_ref,
         m_ref, l_ref, acc_ref) = refs

    qi = pl.program_id(1)
    ki = pl.program_id(2)
    nk = pl.num_programs(2)
    # Last kv tile that actually contributes to this q tile (tq == tk).
    ki_last = qi if causal else nk - 1

    @pl.when(ki == 0)
    def _init():
        m_ref[...] = jnp.full_like(m_ref, _NEG_BIG)
        l_ref[...] = jnp.zeros_like(l_ref)
        acc_ref[...] = jnp.zeros_like(acc_ref)

    @pl.when(ki <= ki_last)
    def _body():
        tq = q_ref.shape[0]
        tk = k_ref.shape[0]

        # Additive key bias (0 or -1e30) from the padding mask, (1, tk).
        bias = pmb_ref[...].reshape(1, tk)
        if causal:
            rows = qi * tq + lax.broadcasted_iota(jnp.int32, (tq, tk), 0)
            cols = ki * tk + lax.broadcasted_iota(jnp.int32, (tq, tk), 1)
            bias = jnp.where(rows >= cols, bias, _NEG_BIG)            # (tq, tk)
        else:
            bias = jnp.where(am_ref[...] != 0, bias, _NEG_BIG)        # (tq, tk)

        # Fold 1/sqrt(d_k) into q once: O(tq*d) instead of O(tq*tk).
        q = (q_ref[...] * scale).astype(compute_dtype)
        k = k_ref[...].astype(compute_dtype)
        v = v_ref[...].astype(compute_dtype)

        for h in range(n_heads):                      # static unroll over heads
            sl = slice(h * d_k, (h + 1) * d_k)
            # Contract feature dims directly (no k.T -> no XLU transpose).
            s = lax.dot_general(q[:, sl], k[:, sl], (((1,), (1,)), ((), ())),
                                preferred_element_type=jnp.float32) + bias
            m_prev = m_ref[:, h:h + 1]
            l_prev = l_ref[:, h:h + 1]
            m_new = jnp.maximum(m_prev, jnp.max(s, axis=-1, keepdims=True))
            alpha = jnp.exp(m_prev - m_new)
            p = jnp.exp(s - m_new)
            l_new = alpha * l_prev + jnp.sum(p, axis=-1, keepdims=True)
            pv = jnp.dot(p.astype(compute_dtype), v[:, sl],
                         preferred_element_type=jnp.float32)          # (tq, d_k)
            # In-place per-head updates: live ranges bounded to one head.
            acc_ref[:, sl] = alpha * acc_ref[:, sl] + pv
            m_ref[:, h:h + 1] = m_new
            l_ref[:, h:h + 1] = l_new

    @pl.when(ki == ki_last)
    def _finalize():
        # One EUP reciprocal over all heads instead of n_heads VALU divides.
        inv_l = pl.reciprocal(jnp.maximum(l_ref[...], 1e-30), approx=True)
        for h in range(n_heads):
            sl = slice(h * d_k, (h + 1) * d_k)
            acc_ref[:, sl] = acc_ref[:, sl] * inv_l[:, h:h + 1]
        attn = acc_ref[...]                                           # (tq, d_model)
        # Fused output projection: attn @ Wo.T + bo (one lane-dense store).
        y = lax.dot_general(attn.astype(compute_dtype),
                            wo_ref[...].astype(compute_dtype),
                            (((1,), (1,)), ((), ())),
                            preferred_element_type=jnp.float32) + bo_ref[...]
        o_ref[...] = y.astype(o_ref.dtype)


def pallas_attention(qh, kh, vh, attn_mask, key_bias, o_w, o_b, n_heads, d_k,
                     *, block_seq, causal, compute_dtype=jnp.float32):
    """qh/kh/vh: (bs, seq_pad, d_model) with heads packed on the feature axis.
    key_bias: (bs, 1, seq_pad) additive bias (0 valid / -1e30 padded key).
    attn_mask: (seq_pad, seq_pad) or None when causal=True."""
    bs, seq_pad, d_model = qh.shape
    t = block_seq
    assert seq_pad % t == 0
    nq = seq_pad // t
    scale = 1.0 / float(d_k) ** 0.5

    if causal:
        # Clamp kv block index so skipped (ki > qi) steps re-use the previous
        # tile -> no DMA is issued for upper-triangular tiles.
        kv_map = lambda b, qi, ki: (b, jnp.minimum(ki, qi), 0)
        pb_map = lambda b, qi, ki: (b, 0, jnp.minimum(ki, qi))
    else:
        kv_map = lambda b, qi, ki: (b, ki, 0)
        pb_map = lambda b, qi, ki: (b, 0, ki)

    in_specs = [
        pl.BlockSpec((None, t, d_model), lambda b, qi, ki: (b, qi, 0)),   # q
        pl.BlockSpec((None, t, d_model), kv_map),                         # k
        pl.BlockSpec((None, t, d_model), kv_map),                         # v
    ]
    inputs = [qh, kh, vh]
    if not causal:
        in_specs.append(pl.BlockSpec((t, t), lambda b, qi, ki: (qi, ki)))  # attn mask
        inputs.append(attn_mask)
    in_specs += [
        pl.BlockSpec((None, 1, t), pb_map),                               # key bias
        pl.BlockSpec((d_model, d_model), lambda b, qi, ki: (0, 0)),       # Wo
        pl.BlockSpec((1, d_model), lambda b, qi, ki: (0, 0)),             # bo
    ]
    inputs += [key_bias, o_w, o_b.reshape(1, d_model)]

    kernel = functools.partial(_attn_kernel, causal=causal, n_heads=n_heads,
                               d_k=d_k, scale=scale, compute_dtype=compute_dtype)

    return pl.pallas_call(
        kernel,
        out_shape=jax.ShapeDtypeStruct((bs, seq_pad, d_model), jnp.float32),
        grid=(bs, nq, nq),
        in_specs=in_specs,
        out_specs=pl.BlockSpec((None, t, d_model), lambda b, qi, ki: (b, qi, 0)),
        scratch_shapes=[
            pltpu.VMEM((t, n_heads), jnp.float32),    # running max per head
            pltpu.VMEM((t, n_heads), jnp.float32),    # running denominator per head
            pltpu.VMEM((t, d_model), jnp.float32),    # running numerator (heads packed)
        ],
        compiler_params=pltpu.CompilerParams(
            dimension_semantics=("parallel", "parallel", "arbitrary"),
            vmem_limit_bytes=_VMEM_LIMIT),
    )(*inputs)


# ----------------------------------------------------------------------------
# MultiHeadAttention forward.
# ----------------------------------------------------------------------------
def multi_head_attention(params, q, k, v, attn_mask, padding_mask, n_heads, d_k,
                         *, causal=False, block_seq=256, row_tile=512,
                         compute_dtype=jnp.float32):
    bs, seq, d_model = q.shape
    assert n_heads * d_k == d_model

    # Pad seq to a tile multiple (avoids full-extent fallback blocks).
    t = min(block_seq, _round_up(seq, 8))
    seq_pad = _round_up(seq, t)
    pad = seq_pad - seq
    if pad:
        padx = lambda x: jnp.pad(x, ((0, 0), (0, pad), (0, 0)))
        q, k, v = padx(q), padx(k), padx(v)
        padding_mask = jnp.pad(padding_mask, ((0, 0), (0, pad)))       # 0 = masked
        if not causal:
            attn_mask = jnp.pad(attn_mask, ((0, pad), (0, pad)))       # 0 = masked

    # 1) fused Q/K/V projection
    qh, kh, vh = pallas_qkv_proj(q, k, v, params, row_tile=row_tile,
                                 compute_dtype=compute_dtype)

    # Pre-fold the padding mask into a per-key additive bias (bs, 1, seq_pad).
    key_bias = jnp.where(padding_mask == 0.0, _NEG_BIG, 0.0).astype(jnp.float32)
    key_bias = key_bias[:, None, :]

    # 2) attention + fused output projection
    out = pallas_attention(qh, kh, vh,
                           None if causal else attn_mask,
                           key_bias, params["o_w"], params["o_b"],
                           n_heads, d_k, block_seq=t, causal=causal,
                           compute_dtype=compute_dtype)
    return out[:, :seq, :]


# ----------------------------------------------------------------------------
# Pure-JAX reference (for correctness check)
# ----------------------------------------------------------------------------
def reference(params, q, k, v, attn_mask, padding_mask, n_heads, d_k):
    bs, seq, d_model = q.shape

    def lin(x, w, b):
        return x @ w.T + b

    def split(x):
        return x.reshape(bs, seq, n_heads, d_k).transpose(0, 2, 1, 3)

    qh = split(lin(q, params["q_w"], params["q_b"]))
    kh = split(lin(k, params["k_w"], params["k_b"]))
    vh = split(lin(v, params["v_w"], params["v_b"]))

    s = jnp.einsum("bhqd,bhkd->bhqk", qh, kh) / (d_k ** 0.5)
    pm = padding_mask[:, None, None, :]
    s = jnp.where(pm == 0, -jnp.inf, s)
    s = jnp.where(attn_mask[None, None, :, :] == 0, -jnp.inf, s)
    p = jax.nn.softmax(s, axis=-1)
    o = jnp.einsum("bhqk,bhkd->bhqd", p, vh)
    concat = o.transpose(0, 2, 1, 3).reshape(bs, seq, d_model)
    return lin(concat, params["o_w"], params["o_b"])


# ----------------------------------------------------------------------------
# Main
# ----------------------------------------------------------------------------
if __name__ == "__main__":
    bs, seq = 2, 8
    n_heads, d_k = 4, 8
    d_model = n_heads * d_k            # 32

    key = jax.random.PRNGKey(0)
    keys = jax.random.split(key, 12)

    def w_init(k):
        return jax.random.normal(k, (d_model, d_model), jnp.float32) * 0.05

    def b_init(k):
        return jax.random.normal(k, (d_model,), jnp.float32) * 0.01

    params = {
        "q_w": w_init(keys[0]), "q_b": b_init(keys[1]),
        "k_w": w_init(keys[2]), "k_b": b_init(keys[3]),
        "v_w": w_init(keys[4]), "v_b": b_init(keys[5]),
        "o_w": w_init(keys[6]), "o_b": b_init(keys[7]),
    }

    q = jax.random.normal(keys[8], (bs, seq, d_model), jnp.float32)
    k = jax.random.normal(keys[9], (bs, seq, d_model), jnp.float32)
    v = jax.random.normal(keys[10], (bs, seq, d_model), jnp.float32)

    # causal attention mask (seq, seq): 1 = attend, 0 = masked
    attn_mask = jnp.tril(jnp.ones((seq, seq), jnp.float32))
    # padding mask (bs, seq): 1 = valid token, 0 = padding (pad the tail of batch 1)
    padding_mask = jnp.ones((bs, seq), jnp.float32).at[1, 6:].set(0.0)

    # Fast path: causal mask generated in-kernel, upper-triangular kv tiles skipped.
    out_causal = multi_head_attention(params, q, k, v, attn_mask, padding_mask,
                                      n_heads, d_k, causal=True)
    # Generic path: explicit attn_mask DMA'd per tile (same semantics).
    out_masked = multi_head_attention(params, q, k, v, attn_mask, padding_mask,
                                      n_heads, d_k, causal=False)
    out_causal, out_masked = jax.block_until_ready((out_causal, out_masked))

    ref = reference(params, q, k, v, attn_mask, padding_mask, n_heads, d_k)
    assert out_causal.shape == (bs, seq, d_model)
    assert out_masked.shape == (bs, seq, d_model)
    # Tolerance covers the approximate (EUP) reciprocal used in finalize.
    assert jnp.allclose(out_causal, ref, atol=2e-3, rtol=2e-3), \
        f"causal max abs err = {jnp.max(jnp.abs(out_causal - ref))}"
    assert jnp.allclose(out_masked, ref, atol=2e-3, rtol=2e-3), \
        f"masked max abs err = {jnp.max(jnp.abs(out_masked - ref))}"

    print("KERNEL_OK")
</pallas_src>

<mosaic_0001>
module attributes {stable_mosaic.version = 11 : i64} {
  func.func @_qkv_proj_kernel(%arg0: i32, %arg1: memref<8x32xf32, #tpu.memory_space<vmem>>, %arg2: memref<8x32xf32, #tpu.memory_space<vmem>>, %arg3: memref<8x32xf32, #tpu.memory_space<vmem>>, %arg4: memref<32x32xf32, #tpu.memory_space<vmem>>, %arg5: memref<32x32xf32, #tpu.memory_space<vmem>>, %arg6: memref<32x32xf32, #tpu.memory_space<vmem>>, %arg7: memref<1x32xf32, #tpu.memory_space<vmem>>, %arg8: memref<1x32xf32, #tpu.memory_space<vmem>>, %arg9: memref<1x32xf32, #tpu.memory_space<vmem>>, %arg10: memref<8x32xf32, #tpu.memory_space<vmem>>, %arg11: memref<8x32xf32, #tpu.memory_space<vmem>>, %arg12: memref<8x32xf32, #tpu.memory_space<vmem>>) attributes {dimension_semantics = [#tpu.dimension_semantics<parallel>], iteration_bounds = array<i64: 2>, scalar_prefetch = 0 : i64, scratch_operands = 0 : i64, tpu.core_type = #tpu.core_type<tc>, window_params = [{transform_indices = @transform_0, window_bounds = array<i64: 8, 32>}, {transform_indices = @transform_1, window_bounds = array<i64: 8, 32>}, {transform_indices = @transform_2, window_bounds = array<i64: 8, 32>}, {pipeline_mode = #tpu.pipeline_mode<synchronous>, transform_indices = @transform_3, window_bounds = array<i64: 32, 32>}, {pipeline_mode = #tpu.pipeline_mode<synchronous>, transform_indices = @transform_4, window_bounds = array<i64: 32, 32>}, {pipeline_mode = #tpu.pipeline_mode<synchronous>, transform_indices = @transform_5, window_bounds = array<i64: 32, 32>}, {pipeline_mode = #tpu.pipeline_mode<synchronous>, transform_indices = @transform_6, window_bounds = array<i64: 1, 32>}, {pipeline_mode = #tpu.pipeline_mode<synchronous>, transform_indices = @transform_7, window_bounds = array<i64: 1, 32>}, {pipeline_mode = #tpu.pipeline_mode<synchronous>, transform_indices = @transform_8, window_bounds = array<i64: 1, 32>}, {transform_indices = @transform_9, window_bounds = array<i64: 8, 32>}, {transform_indices = @transform_10, window_bounds = array<i64: 8, 32>}, {transform_indices = @transform_11, window_bounds = array<i64: 8, 32>}]} {
    %c0 = arith.constant 0 : index
    %c0_0 = arith.constant 0 : index
    %0 = vector.load %arg1[%c0, %c0_0] : memref<8x32xf32, #tpu.memory_space<vmem>>, vector<8x32xf32>
    %c0_1 = arith.constant 0 : index
    %c0_2 = arith.constant 0 : index
    %1 = vector.load %arg4[%c0_1, %c0_2] : memref<32x32xf32, #tpu.memory_space<vmem>>, vector<32x32xf32>
    %cst = arith.constant dense<0.000000e+00> : vector<8x32xf32>
    %2 = tpu.matmul %0, %1, %cst {dimension_numbers = #tpu.dot_dimension_numbers<[1], [1], [0], [0], [0, 0, 1, 0], [], []>} : vector<8x32xf32>, vector<32x32xf32>, vector<8x32xf32> -> vector<8x32xf32>
    %c0_3 = arith.constant 0 : index
    %c0_4 = arith.constant 0 : index
    %3 = vector.load %arg7[%c0_3, %c0_4] : memref<1x32xf32, #tpu.memory_space<vmem>>, vector<1x32xf32>
    %4 = vector.broadcast %3 : vector<1x32xf32> to vector<8x32xf32>
    %5 = arith.addf %2, %4 : vector<8x32xf32>
    %c0_5 = arith.constant 0 : index
    %c0_6 = arith.constant 0 : index
    %6 = vector.load %arg10[%c0_5, %c0_6] : memref<8x32xf32, #tpu.memory_space<vmem>>, vector<8x32xf32>
    tpu.vector_store %arg10[%c0_5, %c0_6], %5 {strides = array<i32>} : memref<8x32xf32, #tpu.memory_space<vmem>>, vector<8x32xf32>,
    %c0_7 = arith.constant 0 : index
    %c0_8 = arith.constant 0 : index
    %7 = vector.load %arg2[%c0_7, %c0_8] : memref<8x32xf32, #tpu.memory_space<vmem>>, vector<8x32xf32>
    %c0_9 = arith.constant 0 : index
    %c0_10 = arith.constant 0 : index
    %8 = vector.load %arg5[%c0_9, %c0_10] : memref<32x32xf32, #tpu.memory_space<vmem>>, vector<32x32xf32>
    %cst_11 = arith.constant dense<0.000000e+00> : vector<8x32xf32>
    %9 = tpu.matmul %7, %8, %cst_11 {dimension_numbers = #tpu.dot_dimension_numbers<[1], [1], [0], [0], [0, 0, 1, 0], [], []>} : vector<8x32xf32>, vector<32x32xf32>, vector<8x32xf32> -> vector<8x32xf32>
    %c0_12 = arith.constant 0 : index
    %c0_13 = arith.constant 0 : index
    %10 = vector.load %arg8[%c0_12, %c0_13] : memref<1x32xf32, #tpu.memory_space<vmem>>, vector<1x32xf32>
    %11 = vector.broadcast %10 : vector<1x32xf32> to vector<8x32xf32>
    %12 = arith.addf %9, %11 : vector<8x32xf32>
    %c0_14 = arith.constant 0 : index
    %c0_15 = arith.constant 0 : index
    %13 = vector.load %arg11[%c0_14, %c0_15] : memref<8x32xf32, #tpu.memory_space<vmem>>, vector<8x32xf32>
    tpu.vector_store %arg11[%c0_14, %c0_15], %12 {strides = array<i32>} : memref<8x32xf32, #tpu.memory_space<vmem>>, vector<8x32xf32>,
    %c0_16 = arith.constant 0 : index
    %c0_17 = arith.constant 0 : index
    %14 = vector.load %arg3[%c0_16, %c0_17] : memref<8x32xf32, #tpu.memory_space<vmem>>, vector<8x32xf32>
    %c0_18 = arith.constant 0 : index
    %c0_19 = arith.constant 0 : index
    %15 = vector.load %arg6[%c0_18, %c0_19] : memref<32x32xf32, #tpu.memory_space<vmem>>, vector<32x32xf32>
    %cst_20 = arith.constant dense<0.000000e+00> : vector<8x32xf32>
    %16 = tpu.matmul %14, %15, %cst_20 {dimension_numbers = #tpu.dot_dimension_numbers<[1], [1], [0], [0], [0, 0, 1, 0], [], []>} : vector<8x32xf32>, vector<32x32xf32>, vector<8x32xf32> -> vector<8x32xf32>
    %c0_21 = arith.constant 0 : index
    %c0_22 = arith.constant 0 : index
    %17 = vector.load %arg9[%c0_21, %c0_22] : memref<1x32xf32, #tpu.memory_space<vmem>>, vector<1x32xf32>
    %18 = vector.broadcast %17 : vector<1x32xf32> to vector<8x32xf32>
    %19 = arith.addf %16, %18 : vector<8x32xf32>
    %c0_23 = arith.constant 0 : index
    %c0_24 = arith.constant 0 : index
    %20 = vector.load %arg12[%c0_23, %c0_24] : memref<8x32xf32, #tpu.memory_space<vmem>>, vector<8x32xf32>
    tpu.vector_store %arg12[%c0_23, %c0_24], %19 {strides = array<i32>} : memref<8x32xf32, #tpu.memory_space<vmem>>, vector<8x32xf32>,
    return
  }
  func.func @transform_0(%arg0: i32) -> (i32, i32) {
    %c0_i32 = arith.constant 0 : i32
    %c0_i32_0 = arith.constant 0 : i32
    return %arg0, %c0_i32 : i32, i32
  }
  func.func @transform_1(%arg0: i32) -> (i32, i32) {
    %c0_i32 = arith.constant 0 : i32
    %c0_i32_0 = arith.constant 0 : i32
    return %arg0, %c0_i32 : i32, i32
  }
  func.func @transform_2(%arg0: i32) -> (i32, i32) {
    %c0_i32 = arith.constant 0 : i32
    %c0_i32_0 = arith.constant 0 : i32
    return %arg0, %c0_i32 : i32, i32
  }
  func.func @transform_3(%arg0: i32) -> (i32, i32) {
    %c0_i32 = arith.constant 0 : i32
    %c0_i32_0 = arith.constant 0 : i32
    %c0_i32_1 = arith.constant 0 : i32
    return %c0_i32, %c0_i32_0 : i32, i32
  }
  func.func @transform_4(%arg0: i32) -> (i32, i32) {
    %c0_i32 = arith.constant 0 : i32
    %c0_i32_0 = arith.constant 0 : i32
    %c0_i32_1 = arith.constant 0 : i32
    return %c0_i32, %c0_i32_0 : i32, i32
  }
  func.func @transform_5(%arg0: i32) -> (i32, i32) {
    %c0_i32 = arith.constant 0 : i32
    %c0_i32_0 = arith.constant 0 : i32
    %c0_i32_1 = arith.constant 0 : i32
    return %c0_i32, %c0_i32_0 : i32, i32
  }
  func.func @transform_6(%arg0: i32) -> (i32, i32) {
    %c0_i32 = arith.constant 0 : i32
    %c0_i32_0 = arith.constant 0 : i32
    %c0_i32_1 = arith.constant 0 : i32
    return %c0_i32, %c0_i32_0 : i32, i32
  }
  func.func @transform_7(%arg0: i32) -> (i32, i32) {
    %c0_i32 = arith.constant 0 : i32
    %c0_i32_0 = arith.constant 0 : i32
    %c0_i32_1 = arith.constant 0 : i32
    return %c0_i32, %c0_i32_0 : i32, i32
  }
  func.func @transform_8(%arg0: i32) -> (i32, i32) {
    %c0_i32 = arith.constant 0 : i32
    %c0_i32_0 = arith.constant 0 : i32
    %c0_i32_1 = arith.constant 0 : i32
    return %c0_i32, %c0_i32_0 : i32, i32
  }
  func.func @transform_9(%arg0: i32) -> (i32, i32) {
    %c0_i32 = arith.constant 0 : i32
    %c0_i32_0 = arith.constant 0 : i32
    return %arg0, %c0_i32 : i32, i32
  }
  func.func @transform_10(%arg0: i32) -> (i32, i32) {
    %c0_i32 = arith.constant 0 : i32
    %c0_i32_0 = arith.constant 0 : i32
    return %arg0, %c0_i32 : i32, i32
  }
  func.func @transform_11(%arg0: i32) -> (i32, i32) {
    %c0_i32 = arith.constant 0 : i32
    %c0_i32_0 = arith.constant 0 : i32
    return %arg0, %c0_i32 : i32, i32
  }
}

</mosaic_0001>

<llo_original>
// kernel: tpu_custom_call.1
$region0: #{tpu_custom_call.1}
  #allocation0 [shape = 'u32[]', space=smem, size = 0x4, offset = 0x4, fixed_abs, tag = 'smem constant byte address 0x4 - core index']
  #allocation1 [shape = 'u32[72,128]{1,0:T(1,128)}', space=vmem, size = 0x9000, scoped, tag = 'internal scratch']
  %s0 = inlined_call_operand.hbm [shape: f32[16,32], index: 0, kind: input, shape index: {}]
  %s1 = inlined_call_operand.hbm [shape: f32[16,32], index: 1, kind: input, shape index: {}]
  %s2 = inlined_call_operand.hbm [shape: f32[16,32], index: 2, kind: input, shape index: {}]
  %s3 = inlined_call_operand.hbm [shape: f32[32,32], index: 3, kind: input, shape index: {}]
  %s4 = inlined_call_operand.hbm [shape: f32[32,32], index: 4, kind: input, shape index: {}]
  %s5 = inlined_call_operand.hbm [shape: f32[32,32], index: 5, kind: input, shape index: {}]
  %s6 = inlined_call_operand.vmem [shape: f32[1,32], index: 6, kind: input, shape index: {}]
  %s7 = inlined_call_operand.vmem [shape: f32[1,32], index: 7, kind: input, shape index: {}]
  %s8 = inlined_call_operand.vmem [shape: f32[1,32], index: 8, kind: input, shape index: {}]
  %s9 = inlined_call_operand.hbm [shape: f32[16,32], index: 9, kind: output, shape index: {0}]
  %s10 = inlined_call_operand.hbm [shape: f32[16,32], index: 10, kind: output, shape index: {1}]
  %s11 = inlined_call_operand.hbm [shape: f32[16,32], index: 11, kind: output, shape index: {2}]
  %12 = xla_tuple %s9, %s10, %s11
  %s13 = sld [smem:[#allocation0]]
  $region109: #{tpu_custom_call.1} parent=0
    _
  %s15 = ssub.s32 1, %s13
  %s16 = scalar_select 0, %s15, %s13
  $region1: #{tpu_custom_call.1} parent=0
    #allocation2 [shape = 'u8[8192]{0}', space=vmem, size = 0x2000, scoped, tag = 'input window, operand 0']
    #allocation3 [shape = 's32[2]{0}', space=sflag, size = 0x8, scoped, tag = 'scoped memory for tpu_custom_call.1']
    #allocation4 [shape = 's32[2]{0}', space=sflag, size = 0x8, scoped, tag = 'scoped memory for tpu_custom_call.1']
    #allocation5 [shape = 'u8[8192]{0}', space=vmem, size = 0x2000, scoped, tag = 'input window, operand 1']
    #allocation6 [shape = 's32[2]{0}', space=sflag, size = 0x8, scoped, tag = 'scoped memory for tpu_custom_call.1']
    #allocation7 [shape = 'u8[8192]{0}', space=vmem, size = 0x2000, scoped, tag = 'input window, operand 2']
    #allocation8 [shape = 'u8[16384]{0}', space=vmem, size = 0x4000, scoped, tag = 'input window, operand 3, single buffered']
    #allocation9 [shape = 's32[1]{0}', space=sflag, size = 0x4, scoped, tag = 'scoped memory for tpu_custom_call.1']
    #allocation10 [shape = 'u8[16384]{0}', space=vmem, size = 0x4000, scoped, tag = 'input window, operand 4, single buffered']
    #allocation11 [shape = 'u8[16384]{0}', space=vmem, size = 0x4000, scoped, tag = 'input window, operand 5, single buffered']
    #allocation12 [shape = 's32[1]{0}', space=sflag, size = 0x4, scoped, tag = 'scoped memory for tpu_custom_call.1']
    #allocation13 [shape = 'u8[8192]{0}', space=vmem, size = 0x2000, scoped, tag = 'output window, operand 0']
    #allocation14 [shape = 'u8[8192]{0}', space=vmem, size = 0x2000, scoped, tag = 'output window, operand 1']
    #allocation15 [shape = 's32[2]{0}', space=sflag, size = 0x8, scoped, tag = 'scoped memory for tpu_custom_call.1']
    #allocation16 [shape = 'u8[8192]{0}', space=vmem, size = 0x2000, scoped, tag = 'output window, operand 2']
    %17 = vsyncpa [#allocation3], 0
    %s18 = scalar_lea.sflag [#allocation3], 1
    %19 = vsyncpa %s18, 0
    %20 = vsyncpa [#allocation6], 0
    %s21 = scalar_lea.sflag [#allocation6], 1
    %22 = vsyncpa %s21, 0
    %23 = vsyncpa [#allocation9], 0
    %24 = vsyncpa [#allocation12], 0
    %25 = vsyncpa [#allocation4], 0
    %s26 = scalar_lea.sflag [#allocation4], 1
    %27 = vsyncpa %s26, 0
    %28 = vsyncpa [#allocation15], 0
    %s29 = scalar_lea.sflag [#allocation15], 1
    %30 = vsyncpa %s29, 0
    loop: start=0, step=1, limit=4
    $region2: #{tpu_custom_call.1} parent=1 // loop_pre_header
      _
    $region3: #{tpu_custom_call.1} parent=1 // loop_header
      %s32 = sphi 0, %s36
      %p33 = scmp.ge.s32.totalorder %s32, 4
      %s42 = sphi 0, %s44
      %s45 = sphi 0, %s42
      %s46 = sphi 0, %s45
      %s62 = sphi 0, %s46
      %s68 = sphi 0, %s70
      %s71 = sphi 0, %s68
      %s72 = sphi 0, %s71
      %s88 = sphi 0, %s72
      %s94 = sphi 0, %s96
      %s97 = sphi 0, %s94
      %s98 = sphi 0, %s97
      %s114 = sphi 0, %s98
      %s118 = sphi 0, %s118
      %s120 = sphi 0, %s118
      %s121 = sphi 0, %s120
      %s135 = sphi 0, %s121
      %s139 = sphi 0, %s139
      %s141 = sphi 0, %s139
      %s142 = sphi 0, %s141
      %s156 = sphi 0, %s142
      %s160 = sphi 0, %s160
      %s162 = sphi 0, %s160
      %s163 = sphi 0, %s162
      %s177 = sphi 0, %s163
      %s181 = sphi 0, %s181
      %s183 = sphi 0, %s181
      %s184 = sphi 0, %s183
      %s198 = sphi 0, %s184
      %s202 = sphi 0, %s202
      %s204 = sphi 0, %s202
      %s205 = sphi 0, %s204
      %s219 = sphi 0, %s205
      %s223 = sphi 0, %s223
      %s225 = sphi 0, %s223
      %s226 = sphi 0, %s225
      %s240 = sphi 0, %s226
      %s246 = sphi 0, %s248
      %s249 = sphi 0, %s246
      %s250 = sphi 0, %s249
      %s266 = sphi 0, %s250
      %s272 = sphi 0, %s274
      %s275 = sphi 0, %s272
      %s276 = sphi 0, %s275
      %s292 = sphi 0, %s276
      %s298 = sphi 0, %s300
      %s301 = sphi 0, %s298
      %s302 = sphi 0, %s301
      %s318 = sphi 0, %s302
    $region4: #{tpu_custom_call.1} parent=1 // loop_header_branch
      %35 = sbr.rel (%p33) target = $region8
    $region5: #{tpu_custom_call.1} parent=1 // loop_body
      %s37 = ssub.s32 %s32, 1
      %s38 = ssub.s32 %s32, 2
      %s39 = sadd.s32 %s32, 1
      %s40 = ssub.s32 %s32, %s39
      %p41 = scmp.eq.s32.totalorder %s40, 0
      %s43 = sadd.s32 %s42, 1
      %s44 = scalar_select %p41, %s42, %s43
      %p47 = pneg %p41
      %p48 = scmp.eq.s32.totalorder %s32, 1
      %p49 = por %p47, %p48
      %p50 = scmp.ne.s32.totalorder %s42, %s45
      %p51 = scmp.eq.s32.totalorder %s32, 0
      %p52 = por %p50, %p51
      %p53 = scmp.ne.s32.totalorder %s42, %s45
      %p54 = scmp.eq.s32.totalorder %s37, 1
      %p55 = por %p53, %p54
      %p56 = scmp.ne.s32.totalorder %s45, %s46
      %p57 = scmp.eq.s32.totalorder %s37, 0
      %p58 = por %p56, %p57
      %p59 = scmp.ne.s32.totalorder %s45, %s46
      %p60 = scmp.eq.s32.totalorder %s38, 1
      %p61 = por %p59, %p60
      %p63 = scmp.ne.s32.totalorder %s46, %s62
      %p64 = scmp.eq.s32.totalorder %s38, 0
      %p65 = por %p63, %p64
      %s66 = ssub.s32 %s32, %s39
      %p67 = scmp.eq.s32.totalorder %s66, 0
      %s69 = sadd.s32 %s68, 1
      %s70 = scalar_select %p67, %s68, %s69
      %p73 = pneg %p67
      %p74 = scmp.eq.s32.totalorder %s32, 1
      %p75 = por %p73, %p74
      %p76 = scmp.ne.s32.totalorder %s68, %s71
      %p77 = scmp.eq.s32.totalorder %s32, 0
      %p78 = por %p76, %p77
      %p79 = scmp.ne.s32.totalorder %s68, %s71
      %p80 = scmp.eq.s32.totalorder %s37, 1
      %p81 = por %p79, %p80
      %p82 = scmp.ne.s32.totalorder %s71, %s72
      %p83 = scmp.eq.s32.totalorder %s37, 0
      %p84 = por %p82, %p83
      %p85 = scmp.ne.s32.totalorder %s71, %s72
      %p86 = scmp.eq.s32.totalorder %s38, 1
      %p87 = por %p85, %p86
      %p89 = scmp.ne.s32.totalorder %s72, %s88
      %p90 = scmp.eq.s32.totalorder %s38, 0
      %p91 = por %p89, %p90
      %s92 = ssub.s32 %s32, %s39
      %p93 = scmp.eq.s32.totalorder %s92, 0
      %s95 = sadd.s32 %s94, 1
      %s96 = scalar_select %p93, %s94, %s95
      %p99 = pneg %p93
      %p100 = scmp.eq.s32.totalorder %s32, 1
      %p101 = por %p99, %p100
      %p102 = scmp.ne.s32.totalorder %s94, %s97
      %p103 = scmp.eq.s32.totalorder %s32, 0
      %p104 = por %p102, %p103
      %p105 = scmp.ne.s32.totalorder %s94, %s97
      %p106 = scmp.eq.s32.totalorder %s37, 1
      %p107 = por %p105, %p106
      %p108 = scmp.ne.s32.totalorder %s97, %s98
      %p109 = scmp.eq.s32.totalorder %s37, 0
      %p110 = por %p108, %p109
      %p111 = scmp.ne.s32.totalorder %s97, %s98
      %p112 = scmp.eq.s32.totalorder %s38, 1
      %p113 = por %p111, %p112
      %p115 = scmp.ne.s32.totalorder %s98, %s114
      %p116 = scmp.eq.s32.totalorder %s38, 0
      %p117 = por %p115, %p116
      %s119 = sadd.s32 %s118, 1
      %p122 = scmp.eq.s32.totalorder %s32, 1
      %p123 = scmp.ne.s32.totalorder %s118, %s120
      %p124 = scmp.eq.s32.totalorder %s32, 0
      %p125 = por %p123, %p124
      %p126 = scmp.ne.s32.totalorder %s118, %s120
      %p127 = scmp.eq.s32.totalorder %s37, 1
      %p128 = por %p126, %p127
      %p129 = scmp.ne.s32.totalorder %s120, %s121
      %p130 = scmp.eq.s32.totalorder %s37, 0
      %p131 = por %p129, %p130
      %p132 = scmp.ne.s32.totalorder %s120, %s121
      %p133 = scmp.eq.s32.totalorder %s38, 1
      %p134 = por %p132, %p133
      %p136 = scmp.ne.s32.totalorder %s121, %s135
      %p137 = scmp.eq.s32.totalorder %s38, 0
      %p138 = por %p136, %p137
      %s140 = sadd.s32 %s139, 1
      %p143 = scmp.eq.s32.totalorder %s32, 1
      %p144 = scmp.ne.s32.totalorder %s139, %s141
      %p145 = scmp.eq.s32.totalorder %s32, 0
      %p146 = por %p144, %p145
      %p147 = scmp.ne.s32.totalorder %s139, %s141
      %p148 = scmp.eq.s32.totalorder %s37, 1
      %p149 = por %p147, %p148
      %p150 = scmp.ne.s32.totalorder %s141, %s142
      %p151 = scmp.eq.s32.totalorder %s37, 0
      %p152 = por %p150, %p151
      %p153 = scmp.ne.s32.totalorder %s141, %s142
      %p154 = scmp.eq.s32.totalorder %s38, 1
      %p155 = por %p153, %p154
      %p157 = scmp.ne.s32.totalorder %s142, %s156
      %p158 = scmp.eq.s32.totalorder %s38, 0
      %p159 = por %p157, %p158
      %s161 = sadd.s32 %s160, 1
      %p164 = scmp.eq.s32.totalorder %s32, 1
      %p165 = scmp.ne.s32.totalorder %s160, %s162
      %p166 = scmp.eq.s32.totalorder %s32, 0
      %p167 = por %p165, %p166
      %p168 = scmp.ne.s32.totalorder %s160, %s162
      %p169 = scmp.eq.s32.totalorder %s37, 1
      %p170 = por %p168, %p169
      %p171 = scmp.ne.s32.totalorder %s162, %s163
      %p172 = scmp.eq.s32.totalorder %s37, 0
      %p173 = por %p171, %p172
      %p174 = scmp.ne.s32.totalorder %s162, %s163
      %p175 = scmp.eq.s32.totalorder %s38, 1
      %p176 = por %p174, %p175
      %p178 = scmp.ne.s32.totalorder %s163, %s177
      %p179 = scmp.eq.s32.totalorder %s38, 0
      %p180 = por %p178, %p179
      %s182 = sadd.s32 %s181, 1
      %p185 = scmp.eq.s32.totalorder %s32, 1
      %p186 = scmp.ne.s32.totalorder %s181, %s183
      %p187 = scmp.eq.s32.totalorder %s32, 0
      %p188 = por %p186, %p187
      %p189 = scmp.ne.s32.totalorder %s181, %s183
      %p190 = scmp.eq.s32.totalorder %s37, 1
      %p191 = por %p189, %p190
      %p192 = scmp.ne.s32.totalorder %s183, %s184
      %p193 = scmp.eq.s32.totalorder %s37, 0
      %p194 = por %p192, %p193
      %p195 = scmp.ne.s32.totalorder %s183, %s184
      %p196 = scmp.eq.s32.totalorder %s38, 1
      %p197 = por %p195, %p196
      %p199 = scmp.ne.s32.totalorder %s184, %s198
      %p200 = scmp.eq.s32.totalorder %s38, 0
      %p201 = por %p199, %p200
      %s203 = sadd.s32 %s202, 1
      %p206 = scmp.eq.s32.totalorder %s32, 1
      %p207 = scmp.ne.s32.totalorder %s202, %s204
      %p208 = scmp.eq.s32.totalorder %s32, 0
      %p209 = por %p207, %p208
      %p210 = scmp.ne.s32.totalorder %s202, %s204
      %p211 = scmp.eq.s32.totalorder %s37, 1
      %p212 = por %p210, %p211
      %p213 = scmp.ne.s32.totalorder %s204, %s205
      %p214 = scmp.eq.s32.totalorder %s37, 0
      %p215 = por %p213, %p214
      %p216 = scmp.ne.s32.totalorder %s204, %s205
      %p217 = scmp.eq.s32.totalorder %s38, 1
      %p218 = por %p216, %p217
      %p220 = scmp.ne.s32.totalorder %s205, %s219
      %p221 = scmp.eq.s32.totalorder %s38, 0
      %p222 = por %p220, %p221
      %s224 = sadd.s32 %s223, 1
      %p227 = scmp.eq.s32.totalorder %s32, 1
      %p228 = scmp.ne.s32.totalorder %s223, %s225
      %p229 = scmp.eq.s32.totalorder %s32, 0
      %p230 = por %p228, %p229
      %p231 = scmp.ne.s32.totalorder %s223, %s225
      %p232 = scmp.eq.s32.totalorder %s37, 1
      %p233 = por %p231, %p232
      %p234 = scmp.ne.s32.totalorder %s225, %s226
      %p235 = scmp.eq.s32.totalorder %s37, 0
      %p236 = por %p234, %p235
      %p237 = scmp.ne.s32.totalorder %s225, %s226
      %p238 = scmp.eq.s32.totalorder %s38, 1
      %p239 = por %p237, %p238
      %p241 = scmp.ne.s32.totalorder %s226, %s240
      %p242 = scmp.eq.s32.totalorder %s38, 0
      %p243 = por %p241, %p242
      %s244 = ssub.s32 %s32, %s39
      %p245 = scmp.eq.s32.totalorder %s244, 0
      %s247 = sadd.s32 %s246, 1
      %s248 = scalar_select %p245, %s246, %s247
      %p251 = pneg %p245
      %p252 = scmp.eq.s32.totalorder %s32, 1
      %p253 = por %p251, %p252
      %p254 = scmp.ne.s32.totalorder %s246, %s249
      %p255 = scmp.eq.s32.totalorder %s32, 0
      %p256 = por %p254, %p255
      %p257 = scmp.ne.s32.totalorder %s246, %s249
      %p258 = scmp.eq.s32.totalorder %s37, 1
      %p259 = por %p257, %p258
      %p260 = scmp.ne.s32.totalorder %s249, %s250
      %p261 = scmp.eq.s32.totalorder %s37, 0
      %p262 = por %p260, %p261
      %p263 = scmp.ne.s32.totalorder %s249, %s250
      %p264 = scmp.eq.s32.totalorder %s38, 1
      %p265 = por %p263, %p264
      %p267 = scmp.ne.s32.totalorder %s250, %s266
      %p268 = scmp.eq.s32.totalorder %s38, 0
      %p269 = por %p267, %p268
      %s270 = ssub.s32 %s32, %s39
      %p271 = scmp.eq.s32.totalorder %s270, 0
      %s273 = sadd.s32 %s272, 1
      %s274 = scalar_select %p271, %s272, %s273
      %p277 = pneg %p271
      %p278 = scmp.eq.s32.totalorder %s32, 1
      %p279 = por %p277, %p278
      %p280 = scmp.ne.s32.totalorder %s272, %s275
      %p281 = scmp.eq.s32.totalorder %s32, 0
      %p282 = por %p280, %p281
      %p283 = scmp.ne.s32.totalorder %s272, %s275
      %p284 = scmp.eq.s32.totalorder %s37, 1
      %p285 = por %p283, %p284
      %p286 = scmp.ne.s32.totalorder %s275, %s276
      %p287 = scmp.eq.s32.totalorder %s37, 0
      %p288 = por %p286, %p287
      %p289 = scmp.ne.s32.totalorder %s275, %s276
      %p290 = scmp.eq.s32.totalorder %s38, 1
      %p291 = por %p289, %p290
      %p293 = scmp.ne.s32.totalorder %s276, %s292
      %p294 = scmp.eq.s32.totalorder %s38, 0
      %p295 = por %p293, %p294
      %s296 = ssub.s32 %s32, %s39
      %p297 = scmp.eq.s32.totalorder %s296, 0
      %s299 = sadd.s32 %s298, 1
      %s300 = scalar_select %p297, %s298, %s299
      %p303 = pneg %p297
      %p304 = scmp.eq.s32.totalorder %s32, 1
      %p305 = por %p303, %p304
      %p306 = scmp.ne.s32.totalorder %s298, %s301
      %p307 = scmp.eq.s32.totalorder %s32, 0
      %p308 = por %p306, %p307
      %p309 = scmp.ne.s32.totalorder %s298, %s301
      %p310 = scmp.eq.s32.totalorder %s37, 1
      %p311 = por %p309, %p310
      %p312 = scmp.ne.s32.totalorder %s301, %s302
      %p313 = scmp.eq.s32.totalorder %s37, 0
      %p314 = por %p312, %p313
      %p315 = scmp.ne.s32.totalorder %s301, %s302
      %p316 = scmp.eq.s32.totalorder %s38, 1
      %p317 = por %p315, %p316
      %p319 = scmp.ne.s32.totalorder %s302, %s318
      %p320 = scmp.eq.s32.totalorder %s38, 0
      %p321 = por %p319, %p320
      %p322 = scmp.le.s32.totalorder 1, %s32
      %p323 = scmp.lt.s32.totalorder %s32, 3
      %p324 = pnand %p322, %p323
      %p325 = pneg %p324
      // Predicated region
      $region9: #{tpu_custom_call.1} parent=5 // pred_check
        _
      $region10: #{tpu_custom_call.1} parent=5 // pred_check_branch
        %327 = sbr.rel (%p324) target = $region12
      $region11: #{tpu_custom_call.1} parent=5 // pred_region
        %s328 = ssub.s32 %s32, 1
        // Predicated region
        $region13: #{tpu_custom_call.1} parent=11 // pred_check
          %p329 = pneg %p131
        $region14: #{tpu_custom_call.1} parent=11 // pred_check_branch
          %331 = sbr.rel (%p329) target = $region16
        $region15: #{tpu_custom_call.1} parent=11 // pred_region
          %333 = vsyncadd [#allocation9], 0
          %s334 = sshll.u32 %s3, 4
          %s335 = int_to_ptr.hbm [resolvable:$true] %s334
          %s336 = sshll.u32 [#allocation8], 4
          %s337 = int_to_ptr.vmem [resolvable:$true] %s336
          %342 = dma.hbm_to_vmem [thread:$0]  %s335, 512, %s337, [#allocation9], 128, 128, 8
        $region16: #{tpu_custom_call.1} parent=11 // pred_fallthru
          _
        // Predicated region
        $region17: #{tpu_custom_call.1} parent=11 // pred_check
          %p343 = pneg %p152
        $region18: #{tpu_custom_call.1} parent=11 // pred_check_branch
          %345 = sbr.rel (%p343) target = $region20
        $region19: #{tpu_custom_call.1} parent=11 // pred_region
          %347 = vsyncadd [#allocation9], 0
          %s348 = sshll.u32 %s4, 4
          %s349 = int_to_ptr.hbm [resolvable:$true] %s348
          %s350 = sshll.u32 [#allocation10], 4
          %s351 = int_to_ptr.vmem [resolvable:$true] %s350
          %356 = dma.hbm_to_vmem [thread:$0]  %s349, 512, %s351, [#allocation9], 128, 128, 8
        $region20: #{tpu_custom_call.1} parent=11 // pred_fallthru
          _
        // Predicated region
        $region21: #{tpu_custom_call.1} parent=11 // pred_check
          %p357 = pneg %p173
        $region22: #{tpu_custom_call.1} parent=11 // pred_check_branch
          %359 = sbr.rel (%p357) target = $region24
        $region23: #{tpu_custom_call.1} parent=11 // pred_region
          %361 = vsyncadd [#allocation12], 0
          %s362 = sshll.u32 %s5, 4
          %s363 = int_to_ptr.hbm [resolvable:$true] %s362
          %s364 = sshll.u32 [#allocation11], 4
          %s365 = int_to_ptr.vmem [resolvable:$true] %s364
          %370 = dma.hbm_to_vmem [thread:$0]  %s363, 512, %s365, [#allocation12], 128, 128, 8
        $region24: #{tpu_custom_call.1} parent=11 // pred_fallthru
          _
        // Predicated region
        $region25: #{tpu_custom_call.1} parent=11 // pred_check
          %p371 = pneg %p194
        $region26: #{tpu_custom_call.1} parent=11 // pred_check_branch
          %373 = sbr.rel (%p371) target = $region28
        $region27: #{tpu_custom_call.1} parent=11 // pred_region
          _
        $region28: #{tpu_custom_call.1} parent=11 // pred_fallthru
          _
        // Predicated region
        $region29: #{tpu_custom_call.1} parent=11 // pred_check
          %p374 = pneg %p215
        $region30: #{tpu_custom_call.1} parent=11 // pred_check_branch
          %376 = sbr.rel (%p374) target = $region32
        $region31: #{tpu_custom_call.1} parent=11 // pred_region
          _
        $region32: #{tpu_custom_call.1} parent=11 // pred_fallthru
          _
        // Predicated region
        $region33: #{tpu_custom_call.1} parent=11 // pred_check
          %p377 = pneg %p236
        $region34: #{tpu_custom_call.1} parent=11 // pred_check_branch
          %379 = sbr.rel (%p377) target = $region36
        $region35: #{tpu_custom_call.1} parent=11 // pred_region
          _
        $region36: #{tpu_custom_call.1} parent=11 // pred_fallthru
          _
      $region12: #{tpu_custom_call.1} parent=5 // pred_fallthru
        _
      %p380 = scmp.lt.s32.totalorder %s32, 2
      // Predicated region
      $region37: #{tpu_custom_call.1} parent=5 // pred_check
        %p381 = pneg %p380
      $region38: #{tpu_custom_call.1} parent=5 // pred_check_branch
        %383 = sbr.rel (%p381) target = $region40
      $region39: #{tpu_custom_call.1} parent=5 // pred_region
        // Predicated region
        $region41: #{tpu_custom_call.1} parent=39 // pred_check
          %p384 = pneg %p52
        $region42: #{tpu_custom_call.1} parent=39 // pred_check_branch
          %386 = sbr.rel (%p384) target = $region44
        $region43: #{tpu_custom_call.1} parent=39 // pred_region
          %s387 = sand.u32 %s42, 1
          %s388 = scalar_lea.sflag [#allocation3], %s387
          %s389 = sand.u32 %s42, 1
          %s390 = smul.addr %s389, 8
          %s391 = scalar_lea.vmem [#allocation2], %s390
          %393 = vsyncadd %s388, 0
          %s394 = smul.addr %s32, 8
          %s395 = scalar_lea.hbm %s0, %s394
          %s397 = sshll.u32 %s395, 4
          %s398 = int_to_ptr.hbm [resolvable:$true] %s397
          %s399 = sshll.u32 %s391, 4
          %s400 = int_to_ptr.vmem [resolvable:$true] %s399
          %402 = dma.hbm_to_vmem [thread:$0]  %s398, 128, %s400, %s388
        $region44: #{tpu_custom_call.1} parent=39 // pred_fallthru
          _
        // Predicated region
        $region45: #{tpu_custom_call.1} parent=39 // pred_check
          %p403 = pneg %p78
        $region46: #{tpu_custom_call.1} parent=39 // pred_check_branch
          %405 = sbr.rel (%p403) target = $region48
        $region47: #{tpu_custom_call.1} parent=39 // pred_region
          %s406 = sand.u32 %s32, 1
          %s407 = scalar_lea.sflag [#allocation6], %s406
          %s408 = sand.u32 %s68, 1
          %s409 = smul.addr %s408, 8
          %s410 = scalar_lea.vmem [#allocation5], %s409
          %412 = vsyncadd %s407, 0
          %s413 = smul.addr %s32, 8
          %s414 = scalar_lea.hbm %s1, %s413
          %s416 = sshll.u32 %s414, 4
          %s417 = int_to_ptr.hbm [resolvable:$true] %s416
          %s418 = sshll.u32 %s410, 4
          %s419 = int_to_ptr.vmem [resolvable:$true] %s418
          %421 = dma.hbm_to_vmem [thread:$0]  %s417, 128, %s419, %s407
        $region48: #{tpu_custom_call.1} parent=39 // pred_fallthru
          _
        // Predicated region
        $region49: #{tpu_custom_call.1} parent=39 // pred_check
          %p422 = pneg %p104
        $region50: #{tpu_custom_call.1} parent=39 // pred_check_branch
          %424 = sbr.rel (%p422) target = $region52
        $region51: #{tpu_custom_call.1} parent=39 // pred_region
          %s425 = sand.u32 %s32, 1
          %s426 = scalar_lea.sflag [#allocation6], %s425
          %s427 = sand.u32 %s94, 1
          %s428 = smul.addr %s427, 8
          %s429 = scalar_lea.vmem [#allocation7], %s428
          %431 = vsyncadd %s426, 0
          %s432 = smul.addr %s32, 8
          %s433 = scalar_lea.hbm %s2, %s432
          %s435 = sshll.u32 %s433, 4
          %s436 = int_to_ptr.hbm [resolvable:$true] %s435
          %s437 = sshll.u32 %s429, 4
          %s438 = int_to_ptr.vmem [resolvable:$true] %s437
          %440 = dma.hbm_to_vmem [thread:$0]  %s436, 128, %s438, %s426
        $region52: #{tpu_custom_call.1} parent=39 // pred_fallthru
          _
      $region40: #{tpu_custom_call.1} parent=5 // pred_fallthru
        _
      %p441 = scmp.le.s32.totalorder 1, %s32
      %p442 = scmp.lt.s32.totalorder %s32, 3
      %p443 = pnand %p441, %p442
      %p444 = pneg %p443
      // Predicated region
      $region53: #{tpu_custom_call.1} parent=5 // pred_check
        _
      $region54: #{tpu_custom_call.1} parent=5 // pred_check_branch
        %446 = sbr.rel (%p443) target = $region56
      $region55: #{tpu_custom_call.1} parent=5 // pred_region
        %s447 = ssub.s32 %s32, 1
        %s448 = sand.u32 %s45, 1
        %s449 = scalar_lea.sflag [#allocation3], %s448
        %s450 = sand.u32 %s45, 1
        %s451 = smul.addr %s450, 8
        %s452 = scalar_lea.vmem [#allocation2], %s451
        // Predicated region
        $region57: #{tpu_custom_call.1} parent=55 // pred_check
          %p453 = pneg %p58
        $region58: #{tpu_custom_call.1} parent=55 // pred_check_branch
          %455 = sbr.rel (%p453) target = $region60
        $region59: #{tpu_custom_call.1} parent=55 // pred_region
          %457 = dma.done %s449, 128
        $region60: #{tpu_custom_call.1} parent=55 // pred_fallthru
          _
        %s458 = sand.u32 %s37, 1
        %s459 = scalar_lea.sflag [#allocation6], %s458
        %s460 = sand.u32 %s71, 1
        %s461 = smul.addr %s460, 8
        %s462 = scalar_lea.vmem [#allocation5], %s461
        // Predicated region
        $region61: #{tpu_custom_call.1} parent=55 // pred_check
          %p463 = pneg %p84
        $region62: #{tpu_custom_call.1} parent=55 // pred_check_branch
          %465 = sbr.rel (%p463) target = $region64
        $region63: #{tpu_custom_call.1} parent=55 // pred_region
          %467 = dma.done %s459, 128
        $region64: #{tpu_custom_call.1} parent=55 // pred_fallthru
          _
        %s468 = sand.u32 %s37, 1
        %s469 = scalar_lea.sflag [#allocation6], %s468
        %s470 = sand.u32 %s97, 1
        %s471 = smul.addr %s470, 8
        %s472 = scalar_lea.vmem [#allocation7], %s471
        // Predicated region
        $region65: #{tpu_custom_call.1} parent=55 // pred_check
          %p473 = pneg %p110
        $region66: #{tpu_custom_call.1} parent=55 // pred_check_branch
          %475 = sbr.rel (%p473) target = $region68
        $region67: #{tpu_custom_call.1} parent=55 // pred_region
          %477 = dma.done %s469, 128
        $region68: #{tpu_custom_call.1} parent=55 // pred_fallthru
          _
        // Predicated region
        $region69: #{tpu_custom_call.1} parent=55 // pred_check
          %p478 = pneg %p131
        $region70: #{tpu_custom_call.1} parent=55 // pred_check_branch
          %480 = sbr.rel (%p478) target = $region72
        $region71: #{tpu_custom_call.1} parent=55 // pred_region
          %482 = dma.done [#allocation9], 512
        $region72: #{tpu_custom_call.1} parent=55 // pred_fallthru
          _
        // Predicated region
        $region73: #{tpu_custom_call.1} parent=55 // pred_check
          %p483 = pneg %p152
        $region74: #{tpu_custom_call.1} parent=55 // pred_check_branch
          %485 = sbr.rel (%p483) target = $region76
        $region75: #{tpu_custom_call.1} parent=55 // pred_region
          %487 = dma.done [#allocation9], 512
        $region76: #{tpu_custom_call.1} parent=55 // pred_fallthru
          _
        // Predicated region
        $region77: #{tpu_custom_call.1} parent=55 // pred_check
          %p488 = pneg %p173
        $region78: #{tpu_custom_call.1} parent=55 // pred_check_branch
          %490 = sbr.rel (%p488) target = $region80
        $region79: #{tpu_custom_call.1} parent=55 // pred_region
          %492 = dma.done [#allocation12], 512
        $region80: #{tpu_custom_call.1} parent=55 // pred_fallthru
          _
        %s493 = sand.u32 %s45, 1
        %s494 = scalar_lea.sflag [#allocation3], %s493
        %s495 = sand.u32 %s45, 1
        %s496 = smul.addr %s495, 8
        %s497 = scalar_lea.vmem [#allocation2], %s496
        %p498 = pneg %p58
        %p499 = pneg %p55
        %s500 = sand.u32 %s37, 1
        %s501 = scalar_lea.sflag [#allocation6], %s500
        %s502 = sand.u32 %s71, 1
        %s503 = smul.addr %s502, 8
        %s504 = scalar_lea.vmem [#allocation5], %s503
        %p505 = pneg %p84
        %p506 = pneg %p81
        %s507 = sand.u32 %s37, 1
        %s508 = scalar_lea.sflag [#allocation6], %s507
        %s509 = sand.u32 %s97, 1
        %s510 = smul.addr %s509, 8
        %s511 = scalar_lea.vmem [#allocation7], %s510
        %p512 = pneg %p110
        %p513 = pneg %p107
        %p514 = pneg %p131
        %p515 = pneg %p128
        %p516 = pneg %p152
        %p517 = pneg %p149
        %p518 = pneg %p173
        %p519 = pneg %p170
        %p520 = pneg %p194
        %p521 = pneg %p191
        %p522 = pneg %p215
        %p523 = pneg %p212
        %p524 = pneg %p236
        %p525 = pneg %p233
        %p526 = pneg %p262
        %p527 = pneg %p259
        %s528 = sand.u32 %s249, 1
        %s529 = scalar_lea.sflag [#allocation4], %s528
        %s530 = sand.u32 %s249, 1
        %s531 = smul.addr %s530, 8
        %s532 = scalar_lea.vmem [#allocation13], %s531
        %p533 = pneg %p288
        %p534 = pneg %p285
        %s535 = sand.u32 %s37, 1
        %s536 = scalar_lea.sflag [#allocation15], %s535
        %s537 = sand.u32 %s275, 1
        %s538 = smul.addr %s537, 8
        %s539 = scalar_lea.vmem [#allocation14], %s538
        %p540 = pneg %p314
        %p541 = pneg %p311
        %s542 = sand.u32 %s37, 1
        %s543 = scalar_lea.sflag [#allocation15], %s542
        %s544 = sand.u32 %s301, 1
        %s545 = smul.addr %s544, 8
        %s546 = scalar_lea.vmem [#allocation16], %s545
        %v547 = vld [vmem:[%s452] sm:$0xff]
        %v548 = vld [vmem:[#allocation8] sm:$0xff]
        %v549 = vld [vmem:[#allocation8 + $0x8] sm:$0xff]
        %v550 = vld [vmem:[#allocation8 + $0x10] sm:$0xff]
        %v551 = vld [vmem:[#allocation8 + $0x18] sm:$0xff]
        %v552 = vld [vmem:[%s6] sm:$0x1]
        %v554 = vperm.slane %v552, 0
        %vm556 = vcmask 261120
        %v558 = vsel %vm556, %v547, 0
        %v561 = vsel %vm556, %v548, 0
        %v564 = vsel %vm556, %v549, 0
        %v567 = vsel %vm556, %v550, 0
        %v570 = vsel %vm556, %v551, 0
        %572 = vmatpush.xpose.msra.mxu0 0.0
        %573 = vmatpush.xpose.msra.mxu0 0.0
        %574 = vmatpush.xpose.msra.mxu0 0.0
        %575 = vmatpush.xpose.msra.mxu0 0.0
        %576 = vmatpush.xpose.msra.mxu0 0.0
        %577 = vmatpush.xpose.msra.mxu0 0.0
        %578 = vmatpush.xpose.msra.mxu0 0.0
        %579 = vmatpush.xpose.msra.mxu0 0.0
        %580 = vmatpush.xpose.msra.mxu0 0.0
        %581 = vmatpush.xpose.msra.mxu0 0.0
        %582 = vmatpush.xpose.msra.mxu0 0.0
        %583 = vmatpush.xpose.msra.mxu0 0.0
        %584 = vmatpush.xpose.msra.mxu0 %v570
        %585 = vmatpush.xpose.msra.mxu0 %v567
        %586 = vmatpush.xpose.msra.mxu0 %v564
        %587 = vmatpush.xpose.msra.mxu0 %v561
        %588 = vmatmul.f32.gmra.mxu0 %v558
        %v589 = vpop.f32.mrf.mxu0
        %v590 = vadd.f32 %v554, %v589
        %591 = vdwg.mxu0
        %592 = vst.msk [vmem:[%s532] sm:$0xff] %vm556, %v590
        %v593 = vld [vmem:[%s462] sm:$0xff]
        %v594 = vld [vmem:[#allocation10] sm:$0xff]
        %v595 = vld [vmem:[#allocation10 + $0x8] sm:$0xff]
        %v596 = vld [vmem:[#allocation10 + $0x10] sm:$0xff]
        %v597 = vld [vmem:[#allocation10 + $0x18] sm:$0xff]
        %v598 = vld [vmem:[%s7] sm:$0x1]
        %v600 = vperm.slane %v598, 0
        %v603 = vsel %vm556, %v593, 0
        %v606 = vsel %vm556, %v594, 0
        %v609 = vsel %vm556, %v595, 0
        %v612 = vsel %vm556, %v596, 0
        %v615 = vsel %vm556, %v597, 0
        %617 = vmatpush.xpose.msra.mxu0 0.0
        %618 = vmatpush.xpose.msra.mxu0 0.0
        %619 = vmatpush.xpose.msra.mxu0 0.0
        %620 = vmatpush.xpose.msra.mxu0 0.0
        %621 = vmatpush.xpose.msra.mxu0 0.0
        %622 = vmatpush.xpose.msra.mxu0 0.0
        %623 = vmatpush.xpose.msra.mxu0 0.0
        %624 = vmatpush.xpose.msra.mxu0 0.0
        %625 = vmatpush.xpose.msra.mxu0 0.0
        %626 = vmatpush.xpose.msra.mxu0 0.0
        %627 = vmatpush.xpose.msra.mxu0 0.0
        %628 = vmatpush.xpose.msra.mxu0 0.0
        %629 = vmatpush.xpose.msra.mxu0 %v615
        %630 = vmatpush.xpose.msra.mxu0 %v612
        %631 = vmatpush.xpose.msra.mxu0 %v609
        %632 = vmatpush.xpose.msra.mxu0 %v606
        %633 = vmatmul.f32.gmra.mxu0 %v603
        %v634 = vpop.f32.mrf.mxu0
        %v635 = vadd.f32 %v600, %v634
        %636 = vdwg.mxu0
        %637 = vst.msk [vmem:[%s539] sm:$0xff] %vm556, %v635
        %v638 = vld [vmem:[%s472] sm:$0xff]
        %v639 = vld [vmem:[#allocation11] sm:$0xff]
        %v640 = vld [vmem:[#allocation11 + $0x8] sm:$0xff]
        %v641 = vld [vmem:[#allocation11 + $0x10] sm:$0xff]
        %v642 = vld [vmem:[#allocation11 + $0x18] sm:$0xff]
        %v643 = vld [vmem:[%s8] sm:$0x1]
        %v645 = vperm.slane %v643, 0
        %v648 = vsel %vm556, %v638, 0
        %v651 = vsel %vm556, %v639, 0
        %v654 = vsel %vm556, %v640, 0
        %v657 = vsel %vm556, %v641, 0
        %v660 = vsel %vm556, %v642, 0
        %662 = vmatpush.xpose.msra.mxu0 0.0
        %663 = vmatpush.xpose.msra.mxu0 0.0
        %664 = vmatpush.xpose.msra.mxu0 0.0
        %665 = vmatpush.xpose.msra.mxu0 0.0
        %666 = vmatpush.xpose.msra.mxu0 0.0
        %667 = vmatpush.xpose.msra.mxu0 0.0
        %668 = vmatpush.xpose.msra.mxu0 0.0
        %669 = vmatpush.xpose.msra.mxu0 0.0
        %670 = vmatpush.xpose.msra.mxu0 0.0
        %671 = vmatpush.xpose.msra.mxu0 0.0
        %672 = vmatpush.xpose.msra.mxu0 0.0
        %673 = vmatpush.xpose.msra.mxu0 0.0
        %674 = vmatpush.xpose.msra.mxu0 %v660
        %675 = vmatpush.xpose.msra.mxu0 %v657
        %676 = vmatpush.xpose.msra.mxu0 %v654
        %677 = vmatpush.xpose.msra.mxu0 %v651
        %678 = vmatmul.f32.gmra.mxu0 %v648
        %v679 = vpop.f32.mrf.mxu0
        %v680 = vadd.f32 %v645, %v679
        %681 = vdwg.mxu0
        %682 = vst.msk [vmem:[%s546] sm:$0xff] %vm556, %v680
        %s683 = sand.u32 %s249, 1
        %s684 = scalar_lea.sflag [#allocation4], %s683
        %s685 = sand.u32 %s249, 1
        %s686 = smul.addr %s685, 8
        %s687 = scalar_lea.vmem [#allocation13], %s686
        %s688 = sand.u32 %s37, 1
        %s689 = scalar_lea.sflag [#allocation15], %s688
        %s690 = sand.u32 %s275, 1
        %s691 = smul.addr %s690, 8
        %s692 = scalar_lea.vmem [#allocation14], %s691
        %s693 = sand.u32 %s37, 1
        %s694 = scalar_lea.sflag [#allocation15], %s693
        %s695 = sand.u32 %s301, 1
        %s696 = smul.addr %s695, 8
        %s697 = scalar_lea.vmem [#allocation16], %s696
        // Predicated region
        $region81: #{tpu_custom_call.1} parent=55 // pred_check
          %p698 = pneg %p259
        $region82: #{tpu_custom_call.1} parent=55 // pred_check_branch
          %700 = sbr.rel (%p698) target = $region84
        $region83: #{tpu_custom_call.1} parent=55 // pred_region
          %702 = vsyncadd %s684, 0
          %s703 = smul.addr %s37, 8
          %s704 = scalar_lea.hbm %s9, %s703
          %s706 = sshll.u32 %s687, 4
          %s707 = int_to_ptr.vmem [resolvable:$true] %s706
          %s708 = sshll.u32 %s704, 4
          %s709 = int_to_ptr.hbm [resolvable:$true] %s708
          %711 = dma.vmem_to_hbm [thread:$0]  %s707, 128, %s709, %s684
        $region84: #{tpu_custom_call.1} parent=55 // pred_fallthru
          _
        // Predicated region
        $region85: #{tpu_custom_call.1} parent=55 // pred_check
          %p712 = pneg %p285
        $region86: #{tpu_custom_call.1} parent=55 // pred_check_branch
          %714 = sbr.rel (%p712) target = $region88
        $region87: #{tpu_custom_call.1} parent=55 // pred_region
          %716 = vsyncadd %s689, 0
          %s717 = smul.addr %s37, 8
          %s718 = scalar_lea.hbm %s10, %s717
          %s720 = sshll.u32 %s692, 4
          %s721 = int_to_ptr.vmem [resolvable:$true] %s720
          %s722 = sshll.u32 %s718, 4
          %s723 = int_to_ptr.hbm [resolvable:$true] %s722
          %725 = dma.vmem_to_hbm [thread:$0]  %s721, 128, %s723, %s689
        $region88: #{tpu_custom_call.1} parent=55 // pred_fallthru
          _
        // Predicated region
        $region89: #{tpu_custom_call.1} parent=55 // pred_check
          %p726 = pneg %p311
        $region90: #{tpu_custom_call.1} parent=55 // pred_check_branch
          %728 = sbr.rel (%p726) target = $region92
        $region91: #{tpu_custom_call.1} parent=55 // pred_region
          %730 = vsyncadd %s694, 0
          %s731 = smul.addr %s37, 8
          %s732 = scalar_lea.hbm %s11, %s731
          %s734 = sshll.u32 %s697, 4
          %s735 = int_to_ptr.vmem [resolvable:$true] %s734
          %s736 = sshll.u32 %s732, 4
          %s737 = int_to_ptr.hbm [resolvable:$true] %s736
          %739 = dma.vmem_to_hbm [thread:$0]  %s735, 128, %s737, %s694
        $region92: #{tpu_custom_call.1} parent=55 // pred_fallthru
          _
      $region56: #{tpu_custom_call.1} parent=5 // pred_fallthru
        _
      %p740 = scmp.le.s32.totalorder 2, %s32
      // Predicated region
      $region93: #{tpu_custom_call.1} parent=5 // pred_check
        %p741 = pneg %p740
      $region94: #{tpu_custom_call.1} parent=5 // pred_check_branch
        %743 = sbr.rel (%p741) target = $region96
      $region95: #{tpu_custom_call.1} parent=5 // pred_region
        %s744 = ssub.s32 %s32, 2
        // Predicated region
        $region97: #{tpu_custom_call.1} parent=95 // pred_check
          %p745 = pneg %p265
        $region98: #{tpu_custom_call.1} parent=95 // pred_check_branch
          %747 = sbr.rel (%p745) target = $region100
        $region99: #{tpu_custom_call.1} parent=95 // pred_region
          %s748 = sand.u32 %s250, 1
          %s749 = scalar_lea.sflag [#allocation4], %s748
          %s750 = sand.u32 %s250, 1
          %s751 = smul.addr %s750, 8
          %s752 = scalar_lea.vmem [#allocation13], %s751
          %754 = dma.done %s749, 128
        $region100: #{tpu_custom_call.1} parent=95 // pred_fallthru
          _
        // Predicated region
        $region101: #{tpu_custom_call.1} parent=95 // pred_check
          %p755 = pneg %p291
        $region102: #{tpu_custom_call.1} parent=95 // pred_check_branch
          %757 = sbr.rel (%p755) target = $region104
        $region103: #{tpu_custom_call.1} parent=95 // pred_region
          %s758 = sand.u32 %s38, 1
          %s759 = scalar_lea.sflag [#allocation15], %s758
          %s760 = sand.u32 %s276, 1
          %s761 = smul.addr %s760, 8
          %s762 = scalar_lea.vmem [#allocation14], %s761
          %764 = dma.done %s759, 128
        $region104: #{tpu_custom_call.1} parent=95 // pred_fallthru
          _
        // Predicated region
        $region105: #{tpu_custom_call.1} parent=95 // pred_check
          %p765 = pneg %p317
        $region106: #{tpu_custom_call.1} parent=95 // pred_check_branch
          %767 = sbr.rel (%p765) target = $region108
        $region107: #{tpu_custom_call.1} parent=95 // pred_region
          %s768 = sand.u32 %s38, 1
          %s769 = scalar_lea.sflag [#allocation15], %s768
          %s770 = sand.u32 %s302, 1
          %s771 = smul.addr %s770, 8
          %s772 = scalar_lea.vmem [#allocation16], %s771
          %774 = dma.done %s769, 128
        $region108: #{tpu_custom_call.1} parent=95 // pred_fallthru
          _
      $region96: #{tpu_custom_call.1} parent=5 // pred_fallthru
        _
    $region6: #{tpu_custom_call.1} parent=1 // loop_footer
      %s36 = sadd.s32 1, %s32
    $region7: #{tpu_custom_call.1} parent=1 // loop_footer_branch
      %31 = sbr.rel target = $region3
    $region8: #{tpu_custom_call.1} parent=1 // loop_exit
      _
    %775 = vsyncpa [#allocation3], 1
    %s776 = scalar_lea.sflag [#allocation3], 1
    %777 = vsyncpa %s776, 1
    %778 = vsyncpa [#allocation6], 1
    %s779 = scalar_lea.sflag [#allocation6], 1
    %780 = vsyncpa %s779, 1
    %781 = vsyncpa [#allocation9], 1
    %782 = vsyncpa [#allocation12], 1
    %783 = vsyncpa [#allocation4], 1
    %s784 = scalar_lea.sflag [#allocation4], 1
    %785 = vsyncpa %s784, 1
    %786 = vsyncpa [#allocation15], 1
    %s787 = scalar_lea.sflag [#allocation15], 1
    %788 = vsyncpa %s787, 1

</llo_original>
